<compile_context>
chip_gen: v6e
topology: v6e:2x2x1
jax: 0.10.0
libtpu: 0.0.40
codegen_flags: <defaults>
</compile_context>

<pallas_src>
import math
import jax
import jax.numpy as jnp
from jax.experimental import pallas as pl
from jax.experimental.pallas import tpu as pltpu


def _fused_kernel(use_bias: bool):
    """sum/mean path: neighbor reduction folded into one MXU matmul.

    x_ref: (TILE_N, K*D)  lane-dense activation tile
    w_ref: (K*D, O)       stacked weight [W; W; ...; W] (pre-scaled by 1/K for mean)
    """

    def kernel(x_ref, w_ref, *rest):
        if use_bias:
            b_ref, out_ref = rest
        else:
            (out_ref,) = rest

        x = x_ref[...]
        w = w_ref[...]
        if x.dtype != w.dtype:
            x = x.astype(w.dtype)  # bf16-at-the-dot when enabled (f32 accumulate below)
        hidden = jnp.dot(x, w, preferred_element_type=jnp.float32)

        if use_bias:
            hidden = hidden + b_ref[...]  # (1, O) broadcasts over rows

        # TODO(synk): when O < 128, a packed (TILE_N*O/128, 128) lane-dense store
        # (with a free wrapper-side reshape back to (N, O)) would avoid masked
        # vst.msk partial stores; skipped here to keep the lowering simple.
        out_ref[...] = hidden.astype(out_ref.dtype)

    return kernel


def _max_kernel(K: int, use_bias: bool):
    """max path: unrolled VPU max over the neighbor axis, then MXU matmul."""

    def kernel(nf_ref, w_ref, *rest):
        if use_bias:
            b_ref, out_ref = rest
        else:
            (out_ref,) = rest

        acc = nf_ref[:, 0, :].astype(jnp.float32)
        for k in range(1, K):  # K is small & static -> unrolled VPU maxes
            acc = jnp.maximum(acc, nf_ref[:, k, :].astype(jnp.float32))

        w = w_ref[...]
        a = acc.astype(w.dtype) if acc.dtype != w.dtype else acc
        hidden = jnp.dot(a, w, preferred_element_type=jnp.float32)

        if use_bias:
            hidden = hidden + b_ref[...]
        out_ref[...] = hidden.astype(out_ref.dtype)

    return kernel


def _choose_tile_n(
    N: int,
    row_bytes_in: int,
    row_bytes_out: int,
    resident_bytes: int,
    vmem_limit_bytes: int,
    target_cap: int = 2048,
) -> int:
    """Tile rows per grid step.

    Sized so 2x(input tile) + 2x(output tile) + resident weight fits ~70% of the
    VMEM limit, rounded to a multiple of 128 (fills the MXU M dim on v5e), and
    capped so the grid keeps >= 2 steps (both v7x TensorCores get work).
    """
    if N <= 256:
        return N  # small problem: single tile (block == full dim is legal)
    per_row = 2 * row_bytes_in + 2 * row_bytes_out
    budget = int(0.7 * vmem_limit_bytes) - 2 * resident_bytes
    t = max(128, budget // max(per_row, 1))
    t = min(t, target_cap)
    # keep >= 2 grid steps when possible
    t = min(t, max(128, ((N + 1) // 2) // 128 * 128))
    t = max(128, (t // 128) * 128)
    return int(t)


def neighbor_aggregator(
    neighbor_feature,
    weight,
    bias=None,
    aggr_method: str = "mean",
    *,
    use_bf16_dot: bool = False,   # opt-in: PyTorch reference matmul is fp32
    tile_n: int | None = None,
):
    """JAX/Pallas equivalent of NeighborAggregator.forward.

    neighbor_feature: (N, K, D) float32
    weight:           (D, O)    float32
    bias:             (O,)      float32 or None
    returns:          (N, O)    float32
    """
    if aggr_method not in ("mean", "sum", "max"):
        raise ValueError(
            f"Unknown aggr type, expected sum, max, or mean, but got {aggr_method}"
        )

    N, K, D = neighbor_feature.shape
    D_w, O = weight.shape
    assert D == D_w, "input_dim mismatch"
    use_bias = bias is not None

    vmem_limit_bytes = 32 * 1024 * 1024
    w_dtype = jnp.bfloat16 if use_bf16_dot else jnp.float32
    w_itemsize = 2 if use_bf16_dot else 4
    in_itemsize = jnp.dtype(neighbor_feature.dtype).itemsize

    fused = aggr_method in ("mean", "sum")

    if fused:
        # Lane-dense activations: contiguous row-major reshape (free on HBM).
        x = neighbor_feature.reshape(N, K * D)
        # Row-stacked weight so x_flat @ W_stack == sum_k x[:, k, :] @ W.
        w_rhs = jnp.tile(weight.astype(jnp.float32), (K, 1))
        if aggr_method == "mean":
            w_rhs = w_rhs * jnp.float32(1.0 / K)
        w_rhs = w_rhs.astype(w_dtype)
        resident_bytes = K * D * O * w_itemsize + (O * 4 if use_bias else 0)
        row_bytes_in = K * D * in_itemsize
    else:  # max
        x = neighbor_feature
        w_rhs = weight.astype(w_dtype)
        resident_bytes = D * O * w_itemsize + (O * 4 if use_bias else 0)
        row_bytes_in = K * D * in_itemsize

    row_bytes_out = O * 4
    TILE_N = (
        _choose_tile_n(N, row_bytes_in, row_bytes_out, resident_bytes, vmem_limit_bytes)
        if tile_n is None
        else tile_n
    )
    grid = (pl.cdiv(N, TILE_N),)

    if fused:
        kernel = _fused_kernel(use_bias)
        in_specs = [
            pl.BlockSpec((TILE_N, K * D), lambda i: (i, 0)),
            # Constant block index -> weight stays resident in VMEM across steps.
            # (pipeline_mode=pl.Buffered(1) could drop its second buffer; Mosaic
            #  already keeps a single resident copy for a constant index_map.)
            pl.BlockSpec((K * D, O), lambda i: (0, 0)),
        ]
        flops = 2 * N * K * D * O
    else:
        kernel = _max_kernel(K, use_bias)
        in_specs = [
            pl.BlockSpec((TILE_N, K, D), lambda i: (i, 0, 0)),
            pl.BlockSpec((D, O), lambda i: (0, 0)),
        ]
        flops = 2 * N * D * O + N * max(K - 1, 0) * D

    args = [x, w_rhs]
    if use_bias:
        in_specs.append(pl.BlockSpec((1, O), lambda i: (0, 0)))
        args.append(jnp.asarray(bias, dtype=jnp.float32).reshape(1, O))

    bytes_accessed = (
        N * K * D * in_itemsize
        + (K * D if fused else D) * O * w_itemsize
        + N * O * 4
        + (O * 4 if use_bias else 0)
    )
    cost = pl.CostEstimate(flops=flops, transcendentals=0, bytes_accessed=bytes_accessed)

    out = pl.pallas_call(
        kernel,
        out_shape=jax.ShapeDtypeStruct((N, O), jnp.float32),
        grid=grid,
        in_specs=in_specs,
        out_specs=pl.BlockSpec((TILE_N, O), lambda i: (i, 0)),
        compiler_params=pltpu.CompilerParams(
            dimension_semantics=("parallel",),
            vmem_limit_bytes=vmem_limit_bytes,
        ),
        cost_estimate=cost,
    )(*args)
    return out


def kaiming_uniform(key, shape, dtype=jnp.float32):
    """Deterministic equivalent of torch.nn.init.kaiming_uniform_ (a=0, fan_in).

    The module stores weight as (input_dim, output_dim); PyTorch's 2-D fan_in
    convention uses size(1), matching shape[1] here.
    """
    fan_in = shape[1]
    gain = math.sqrt(2.0)
    bound = gain * math.sqrt(3.0 / fan_in)
    return jax.random.uniform(key, shape, dtype=dtype, minval=-bound, maxval=bound)


if __name__ == "__main__":
    # Module hyperparameters.
    input_dim = 32
    output_dim = 32
    use_bias = False          # matches the PyTorch default (and its buggy bias init path)
    aggr_method = "mean"

    # forward() implies (num_nodes, num_neighbors, input_dim).  N chosen so the
    # 1-D grid actually tiles (TILE_N=1024 -> 2 grid steps), K*D = 128 so the
    # lane-dense input block is exactly one vreg wide.
    N, K = 2048, 4

    key = jax.random.PRNGKey(0)
    k_x, k_w = jax.random.split(key)

    neighbor_feature = jax.random.normal(k_x, (N, K, input_dim), dtype=jnp.float32)
    weight = kaiming_uniform(k_w, (input_dim, output_dim))
    bias = jnp.zeros((output_dim,), dtype=jnp.float32) if use_bias else None

    out = neighbor_aggregator(neighbor_feature, weight, bias, aggr_method)
    out = jax.block_until_ready(out)

    # Reference: PyTorch math path (fp32 mean, fp32 matmul).
    aggr_ref = jnp.mean(neighbor_feature, axis=1)
    ref = jnp.dot(aggr_ref, weight, precision=jax.lax.Precision.HIGHEST)
    if use_bias:
        ref = ref + bias[None, :]

    assert out.shape == (N, output_dim)
    # Tolerance covers possible multi-pass MXU fp32 accumulation differences.
    max_err = float(jnp.max(jnp.abs(out - ref)))
    assert jnp.allclose(out, ref, atol=2e-2, rtol=2e-2), max_err

    print("KERNEL_OK")
</pallas_src>

<mosaic_0001>
module attributes {stable_mosaic.version = 11 : i64} {
  func.func @kernel(%arg0: i32, %arg1: memref<1024x128xf32, #tpu.memory_space<vmem>>, %arg2: memref<128x32xf32, #tpu.memory_space<vmem>>, %arg3: memref<1024x32xf32, #tpu.memory_space<vmem>>) attributes {dimension_semantics = [#tpu.dimension_semantics<parallel>], iteration_bounds = array<i64: 2>, scalar_prefetch = 0 : i64, scratch_operands = 0 : i64, tpu.core_type = #tpu.core_type<tc>, window_params = [{transform_indices = @transform_0, window_bounds = array<i64: 1024, 128>}, {pipeline_mode = #tpu.pipeline_mode<synchronous>, transform_indices = @transform_1, window_bounds = array<i64: 128, 32>}, {transform_indices = @transform_2, window_bounds = array<i64: 1024, 32>}]} {
    %c0 = arith.constant 0 : index
    %c0_0 = arith.constant 0 : index
    %0 = vector.load %arg1[%c0, %c0_0] : memref<1024x128xf32, #tpu.memory_space<vmem>>, vector<1024x128xf32>
    %c0_1 = arith.constant 0 : index
    %c0_2 = arith.constant 0 : index
    %1 = vector.load %arg2[%c0_1, %c0_2] : memref<128x32xf32, #tpu.memory_space<vmem>>, vector<128x32xf32>
    %cst = arith.constant dense<0.000000e+00> : vector<1024x32xf32>
    %2 = tpu.matmul %0, %1, %cst {dimension_numbers = #tpu.dot_dimension_numbers<[1], [0], [0], [1], [0, 0, 1, 1], [], []>} : vector<1024x128xf32>, vector<128x32xf32>, vector<1024x32xf32> -> vector<1024x32xf32>
    %c0_3 = arith.constant 0 : index
    %c0_4 = arith.constant 0 : index
    %3 = vector.load %arg3[%c0_3, %c0_4] : memref<1024x32xf32, #tpu.memory_space<vmem>>, vector<1024x32xf32>
    tpu.vector_store %arg3[%c0_3, %c0_4], %2 {strides = array<i32>} : memref<1024x32xf32, #tpu.memory_space<vmem>>, vector<1024x32xf32>,
    return
  }
  func.func @transform_0(%arg0: i32) -> (i32, i32) {
    %c0_i32 = arith.constant 0 : i32
    %c0_i32_0 = arith.constant 0 : i32
    return %arg0, %c0_i32 : i32, i32
  }
  func.func @transform_1(%arg0: i32) -> (i32, i32) {
    %c0_i32 = arith.constant 0 : i32
    %c0_i32_0 = arith.constant 0 : i32
    %c0_i32_1 = arith.constant 0 : i32
    return %c0_i32, %c0_i32_0 : i32, i32
  }
  func.func @transform_2(%arg0: i32) -> (i32, i32) {
    %c0_i32 = arith.constant 0 : i32
    %c0_i32_0 = arith.constant 0 : i32
    return %arg0, %c0_i32 : i32, i32
  }
}

</mosaic_0001>

<llo_original>
// kernel: tpu_custom_call.1
$region0: #{tpu_custom_call.1}
  #allocation0 [shape = 'u32[]', space=smem, size = 0x4, offset = 0x4, fixed_abs, tag = 'smem constant byte address 0x4 - core index']
  #allocation1 [shape = 'u32[144,128]{1,0:T(1,128)}', space=vmem, size = 0x12000, scoped, tag = 'internal scratch']
  %s0 = inlined_call_operand.hbm [shape: f32[2048,128], index: 0, kind: input, shape index: {}]
  %s1 = inlined_call_operand.vmem [shape: f32[128,32], index: 1, kind: input, shape index: {}]
  %s2 = inlined_call_operand.vmem [shape: f32[2048,32], index: 2, kind: output, shape index: {}]
  %s3 = sld [smem:[#allocation0]]
  $region45: #{tpu_custom_call.1} parent=0
    _
  %s5 = ssub.s32 1, %s3
  %s6 = scalar_select 0, %s5, %s3
  $region1: #{tpu_custom_call.1} parent=0
    #allocation2 [shape = 'u8[1048576]{0}', space=vmem, size = 0x100000, scoped, tag = 'input window, operand 0']
    #allocation3 [shape = 's32[2]{0}', space=sflag, size = 0x8, scoped, tag = 'scoped memory for tpu_custom_call.1']
    %7 = vsyncpa [#allocation3], 0
    %s8 = scalar_lea.sflag [#allocation3], 1
    %9 = vsyncpa %s8, 0
    loop: start=0, step=1, limit=4
    $region2: #{tpu_custom_call.1} parent=1 // loop_pre_header
      _
    $region3: #{tpu_custom_call.1} parent=1 // loop_header
      %s11 = sphi 0, %s15
      %p12 = scmp.ge.s32.totalorder %s11, 4
      %s21 = sphi 0, %s23
      %s24 = sphi 0, %s21
      %s25 = sphi 0, %s24
      %s41 = sphi 0, %s25
      %s45 = sphi 0, %s45
      %s47 = sphi 0, %s45
      %s48 = sphi 0, %s47
      %s62 = sphi 0, %s48
      %s68 = sphi 0, %s70
      %s71 = sphi 0, %s68
      %s72 = sphi 0, %s71
      %s88 = sphi 0, %s72
    $region4: #{tpu_custom_call.1} parent=1 // loop_header_branch
      %14 = sbr.rel (%p12) target = $region8
    $region5: #{tpu_custom_call.1} parent=1 // loop_body
      %s16 = ssub.s32 %s11, 1
      %s17 = ssub.s32 %s11, 2
      %s18 = sadd.s32 %s11, 1
      %s19 = ssub.s32 %s11, %s18
      %p20 = scmp.eq.s32.totalorder %s19, 0
      %s22 = sadd.s32 %s21, 1
      %s23 = scalar_select %p20, %s21, %s22
      %p26 = pneg %p20
      %p27 = scmp.eq.s32.totalorder %s11, 1
      %p28 = por %p26, %p27
      %p29 = scmp.ne.s32.totalorder %s21, %s24
      %p30 = scmp.eq.s32.totalorder %s11, 0
      %p31 = por %p29, %p30
      %p32 = scmp.ne.s32.totalorder %s21, %s24
      %p33 = scmp.eq.s32.totalorder %s16, 1
      %p34 = por %p32, %p33
      %p35 = scmp.ne.s32.totalorder %s24, %s25
      %p36 = scmp.eq.s32.totalorder %s16, 0
      %p37 = por %p35, %p36
      %p38 = scmp.ne.s32.totalorder %s24, %s25
      %p39 = scmp.eq.s32.totalorder %s17, 1
      %p40 = por %p38, %p39
      %p42 = scmp.ne.s32.totalorder %s25, %s41
      %p43 = scmp.eq.s32.totalorder %s17, 0
      %p44 = por %p42, %p43
      %s46 = sadd.s32 %s45, 1
      %p49 = scmp.eq.s32.totalorder %s11, 1
      %p50 = scmp.ne.s32.totalorder %s45, %s47
      %p51 = scmp.eq.s32.totalorder %s11, 0
      %p52 = por %p50, %p51
      %p53 = scmp.ne.s32.totalorder %s45, %s47
      %p54 = scmp.eq.s32.totalorder %s16, 1
      %p55 = por %p53, %p54
      %p56 = scmp.ne.s32.totalorder %s47, %s48
      %p57 = scmp.eq.s32.totalorder %s16, 0
      %p58 = por %p56, %p57
      %p59 = scmp.ne.s32.totalorder %s47, %s48
      %p60 = scmp.eq.s32.totalorder %s17, 1
      %p61 = por %p59, %p60
      %p63 = scmp.ne.s32.totalorder %s48, %s62
      %p64 = scmp.eq.s32.totalorder %s17, 0
      %p65 = por %p63, %p64
      %s66 = ssub.s32 %s11, %s18
      %p67 = scmp.eq.s32.totalorder %s66, 0
      %s69 = sadd.s32 %s68, 1
      %s70 = scalar_select %p67, %s68, %s69
      %p73 = pneg %p67
      %p74 = scmp.eq.s32.totalorder %s11, 1
      %p75 = por %p73, %p74
      %p76 = scmp.ne.s32.totalorder %s68, %s71
      %p77 = scmp.eq.s32.totalorder %s11, 0
      %p78 = por %p76, %p77
      %p79 = scmp.ne.s32.totalorder %s68, %s71
      %p80 = scmp.eq.s32.totalorder %s16, 1
      %p81 = por %p79, %p80
      %p82 = scmp.ne.s32.totalorder %s71, %s72
      %p83 = scmp.eq.s32.totalorder %s16, 0
      %p84 = por %p82, %p83
      %p85 = scmp.ne.s32.totalorder %s71, %s72
      %p86 = scmp.eq.s32.totalorder %s17, 1
      %p87 = por %p85, %p86
      %p89 = scmp.ne.s32.totalorder %s72, %s88
      %p90 = scmp.eq.s32.totalorder %s17, 0
      %p91 = por %p89, %p90
      %p92 = scmp.le.s32.totalorder 1, %s11
      %p93 = scmp.lt.s32.totalorder %s11, 3
      %p94 = pnand %p92, %p93
      %p95 = pneg %p94
      // Predicated region
      $region9: #{tpu_custom_call.1} parent=5 // pred_check
        _
      $region10: #{tpu_custom_call.1} parent=5 // pred_check_branch
        %97 = sbr.rel (%p94) target = $region12
      $region11: #{tpu_custom_call.1} parent=5 // pred_region
        %s98 = ssub.s32 %s11, 1
        // Predicated region
        $region13: #{tpu_custom_call.1} parent=11 // pred_check
          %p99 = pneg %p58
        $region14: #{tpu_custom_call.1} parent=11 // pred_check_branch
          %101 = sbr.rel (%p99) target = $region16
        $region15: #{tpu_custom_call.1} parent=11 // pred_region
          _
        $region16: #{tpu_custom_call.1} parent=11 // pred_fallthru
          _
      $region12: #{tpu_custom_call.1} parent=5 // pred_fallthru
        _
      %p102 = scmp.lt.s32.totalorder %s11, 2
      // Predicated region
      $region17: #{tpu_custom_call.1} parent=5 // pred_check
        %p103 = pneg %p102
      $region18: #{tpu_custom_call.1} parent=5 // pred_check_branch
        %105 = sbr.rel (%p103) target = $region20
      $region19: #{tpu_custom_call.1} parent=5 // pred_region
        // Predicated region
        $region21: #{tpu_custom_call.1} parent=19 // pred_check
          %p106 = pneg %p31
        $region22: #{tpu_custom_call.1} parent=19 // pred_check_branch
          %108 = sbr.rel (%p106) target = $region24
        $region23: #{tpu_custom_call.1} parent=19 // pred_region
          %s109 = sand.u32 %s21, 1
          %s110 = scalar_lea.sflag [#allocation3], %s109
          %s111 = sand.u32 %s21, 1
          %s112 = smul.addr %s111, 1024
          %s113 = scalar_lea.vmem [#allocation2], %s112
          %s114 = smul.u32 128, %s11
          %s116 = ssub.s32 16384, 16384
          %117 = vsyncadd %s110, %s116
          %s118 = smul.addr %s114, 128
          %s119 = scalar_lea.hbm %s0, %s118
          %s120 = sshll.u32 %s113, 4
          %s121 = int_to_ptr.vmem [resolvable:$true] %s120
          %126 = dma.hbm_to_vmem [thread:$0]  %s119, 16384, %s121, %s110, 128, 128, 8
        $region24: #{tpu_custom_call.1} parent=19 // pred_fallthru
          _
      $region20: #{tpu_custom_call.1} parent=5 // pred_fallthru
        _
      %p127 = scmp.le.s32.totalorder 1, %s11
      %p128 = scmp.lt.s32.totalorder %s11, 3
      %p129 = pnand %p127, %p128
      %p130 = pneg %p129
      // Predicated region
      $region25: #{tpu_custom_call.1} parent=5 // pred_check
        _
      $region26: #{tpu_custom_call.1} parent=5 // pred_check_branch
        %132 = sbr.rel (%p129) target = $region28
      $region27: #{tpu_custom_call.1} parent=5 // pred_region
        %s133 = ssub.s32 %s11, 1
        %s134 = sand.u32 %s24, 1
        %s135 = scalar_lea.sflag [#allocation3], %s134
        %s136 = sand.u32 %s24, 1
        %s137 = smul.addr %s136, 1024
        %s138 = scalar_lea.vmem [#allocation2], %s137
        // Predicated region
        $region29: #{tpu_custom_call.1} parent=27 // pred_check
          %p139 = pneg %p37
        $region30: #{tpu_custom_call.1} parent=27 // pred_check_branch
          %141 = sbr.rel (%p139) target = $region32
        $region31: #{tpu_custom_call.1} parent=27 // pred_region
          %142 = dma.done %s135, 16384
        $region32: #{tpu_custom_call.1} parent=27 // pred_fallthru
          _
        %s143 = sand.u32 %s24, 1
        %s144 = scalar_lea.sflag [#allocation3], %s143
        %s145 = sand.u32 %s24, 1
        %s146 = smul.addr %s145, 1024
        %s147 = scalar_lea.vmem [#allocation2], %s146
        %p148 = pneg %p37
        %p149 = pneg %p34
        %p150 = pneg %p58
        %p151 = pneg %p55
        %p152 = pneg %p84
        %p153 = pneg %p81
        %s154 = smul.u32 128, %s16
        %p155 = scmp.lt.s32.totalorder %s154, 255
        %s156 = scalar_select %p155, %s154, 255
        %s157 = smul.addr %s156, 8
        %s158 = scalar_lea.vmem %s2, %s157
        %s159 = smul.u32 128, %s16
        %s160 = smul.u32 128, %s16
        %p161 = scmp.lt.s32.totalorder %s160, 255
        %s162 = scalar_select %p161, %s160, 255
        %s163 = smul.addr %s162, 8
        %s164 = scalar_lea.vmem %s2, %s163
        %s165 = smul.u32 128, %s16
        %v166 = vld [vmem:[%s138] sm:$0xff]
        %v167 = vld [vmem:[%s138 + $0x8] sm:$0xff]
        %v168 = vld [vmem:[%s138 + $0x10] sm:$0xff]
        %v169 = vld [vmem:[%s138 + $0x18] sm:$0xff]
        %v170 = vld [vmem:[%s138 + $0x20] sm:$0xff]
        %v171 = vld [vmem:[%s138 + $0x28] sm:$0xff]
        %v172 = vld [vmem:[%s138 + $0x30] sm:$0xff]
        %v173 = vld [vmem:[%s138 + $0x38] sm:$0xff]
        %v174 = vld [vmem:[%s138 + $0x40] sm:$0xff]
        %v175 = vld [vmem:[%s138 + $0x48] sm:$0xff]
        %v176 = vld [vmem:[%s138 + $0x50] sm:$0xff]
        %v177 = vld [vmem:[%s138 + $0x58] sm:$0xff]
        %v178 = vld [vmem:[%s138 + $0x60] sm:$0xff]
        %v179 = vld [vmem:[%s138 + $0x68] sm:$0xff]
        %v180 = vld [vmem:[%s138 + $0x70] sm:$0xff]
        %v181 = vld [vmem:[%s138 + $0x78] sm:$0xff]
        %v182 = vld [vmem:[%s138 + $0x80] sm:$0xff]
        %v183 = vld [vmem:[%s138 + $0x88] sm:$0xff]
        %v184 = vld [vmem:[%s138 + $0x90] sm:$0xff]
        %v185 = vld [vmem:[%s138 + $0x98] sm:$0xff]
        %v186 = vld [vmem:[%s138 + $0xa0] sm:$0xff]
        %v187 = vld [vmem:[%s138 + $0xa8] sm:$0xff]
        %v188 = vld [vmem:[%s138 + $0xb0] sm:$0xff]
        %v189 = vld [vmem:[%s138 + $0xb8] sm:$0xff]
        %v190 = vld [vmem:[%s138 + $0xc0] sm:$0xff]
        %v191 = vld [vmem:[%s138 + $0xc8] sm:$0xff]
        %v192 = vld [vmem:[%s138 + $0xd0] sm:$0xff]
        %v193 = vld [vmem:[%s138 + $0xd8] sm:$0xff]
        %v194 = vld [vmem:[%s138 + $0xe0] sm:$0xff]
        %v195 = vld [vmem:[%s138 + $0xe8] sm:$0xff]
        %v196 = vld [vmem:[%s138 + $0xf0] sm:$0xff]
        %v197 = vld [vmem:[%s138 + $0xf8] sm:$0xff]
        %v198 = vld [vmem:[%s138 + $0x100] sm:$0xff]
        %v199 = vld [vmem:[%s138 + $0x108] sm:$0xff]
        %v200 = vld [vmem:[%s138 + $0x110] sm:$0xff]
        %v201 = vld [vmem:[%s138 + $0x118] sm:$0xff]
        %v202 = vld [vmem:[%s138 + $0x120] sm:$0xff]
        %v203 = vld [vmem:[%s138 + $0x128] sm:$0xff]
        %v204 = vld [vmem:[%s138 + $0x130] sm:$0xff]
        %v205 = vld [vmem:[%s138 + $0x138] sm:$0xff]
        %v206 = vld [vmem:[%s138 + $0x140] sm:$0xff]
        %v207 = vld [vmem:[%s138 + $0x148] sm:$0xff]
        %v208 = vld [vmem:[%s138 + $0x150] sm:$0xff]
        %v209 = vld [vmem:[%s138 + $0x158] sm:$0xff]
        %v210 = vld [vmem:[%s138 + $0x160] sm:$0xff]
        %v211 = vld [vmem:[%s138 + $0x168] sm:$0xff]
        %v212 = vld [vmem:[%s138 + $0x170] sm:$0xff]
        %v213 = vld [vmem:[%s138 + $0x178] sm:$0xff]
        %v214 = vld [vmem:[%s138 + $0x180] sm:$0xff]
        %v215 = vld [vmem:[%s138 + $0x188] sm:$0xff]
        %v216 = vld [vmem:[%s138 + $0x190] sm:$0xff]
        %v217 = vld [vmem:[%s138 + $0x198] sm:$0xff]
        %v218 = vld [vmem:[%s138 + $0x1a0] sm:$0xff]
        %v219 = vld [vmem:[%s138 + $0x1a8] sm:$0xff]
        %v220 = vld [vmem:[%s138 + $0x1b0] sm:$0xff]
        %v221 = vld [vmem:[%s138 + $0x1b8] sm:$0xff]
        %v222 = vld [vmem:[%s138 + $0x1c0] sm:$0xff]
        %v223 = vld [vmem:[%s138 + $0x1c8] sm:$0xff]
        %v224 = vld [vmem:[%s138 + $0x1d0] sm:$0xff]
        %v225 = vld [vmem:[%s138 + $0x1d8] sm:$0xff]
        %v226 = vld [vmem:[%s138 + $0x1e0] sm:$0xff]
        %v227 = vld [vmem:[%s138 + $0x1e8] sm:$0xff]
        %v228 = vld [vmem:[%s138 + $0x1f0] sm:$0xff]
        %v229 = vld [vmem:[%s138 + $0x1f8] sm:$0xff]
        %v230 = vld [vmem:[%s138 + $0x200] sm:$0xff]
        %v231 = vld [vmem:[%s138 + $0x208] sm:$0xff]
        %v232 = vld [vmem:[%s138 + $0x210] sm:$0xff]
        %v233 = vld [vmem:[%s138 + $0x218] sm:$0xff]
        %v234 = vld [vmem:[%s138 + $0x220] sm:$0xff]
        %v235 = vld [vmem:[%s138 + $0x228] sm:$0xff]
        %v236 = vld [vmem:[%s138 + $0x230] sm:$0xff]
        %v237 = vld [vmem:[%s138 + $0x238] sm:$0xff]
        %v238 = vld [vmem:[%s138 + $0x240] sm:$0xff]
        %v239 = vld [vmem:[%s138 + $0x248] sm:$0xff]
        %v240 = vld [vmem:[%s138 + $0x250] sm:$0xff]
        %v241 = vld [vmem:[%s138 + $0x258] sm:$0xff]
        %v242 = vld [vmem:[%s138 + $0x260] sm:$0xff]
        %v243 = vld [vmem:[%s138 + $0x268] sm:$0xff]
        %v244 = vld [vmem:[%s138 + $0x270] sm:$0xff]
        %v245 = vld [vmem:[%s138 + $0x278] sm:$0xff]
        %v246 = vld [vmem:[%s138 + $0x280] sm:$0xff]
        %v247 = vld [vmem:[%s138 + $0x288] sm:$0xff]
        %v248 = vld [vmem:[%s138 + $0x290] sm:$0xff]
        %v249 = vld [vmem:[%s138 + $0x298] sm:$0xff]
        %v250 = vld [vmem:[%s138 + $0x2a0] sm:$0xff]
        %v251 = vld [vmem:[%s138 + $0x2a8] sm:$0xff]
        %v252 = vld [vmem:[%s138 + $0x2b0] sm:$0xff]
        %v253 = vld [vmem:[%s138 + $0x2b8] sm:$0xff]
        %v254 = vld [vmem:[%s138 + $0x2c0] sm:$0xff]
        %v255 = vld [vmem:[%s138 + $0x2c8] sm:$0xff]
        %v256 = vld [vmem:[%s138 + $0x2d0] sm:$0xff]
        %v257 = vld [vmem:[%s138 + $0x2d8] sm:$0xff]
        %v258 = vld [vmem:[%s138 + $0x2e0] sm:$0xff]
        %v259 = vld [vmem:[%s138 + $0x2e8] sm:$0xff]
        %v260 = vld [vmem:[%s138 + $0x2f0] sm:$0xff]
        %v261 = vld [vmem:[%s138 + $0x2f8] sm:$0xff]
        %v262 = vld [vmem:[%s138 + $0x300] sm:$0xff]
        %v263 = vld [vmem:[%s138 + $0x308] sm:$0xff]
        %v264 = vld [vmem:[%s138 + $0x310] sm:$0xff]
        %v265 = vld [vmem:[%s138 + $0x318] sm:$0xff]
        %v266 = vld [vmem:[%s138 + $0x320] sm:$0xff]
        %v267 = vld [vmem:[%s138 + $0x328] sm:$0xff]
        %v268 = vld [vmem:[%s138 + $0x330] sm:$0xff]
        %v269 = vld [vmem:[%s138 + $0x338] sm:$0xff]
        %v270 = vld [vmem:[%s138 + $0x340] sm:$0xff]
        %v271 = vld [vmem:[%s138 + $0x348] sm:$0xff]
        %v272 = vld [vmem:[%s138 + $0x350] sm:$0xff]
        %v273 = vld [vmem:[%s138 + $0x358] sm:$0xff]
        %v274 = vld [vmem:[%s138 + $0x360] sm:$0xff]
        %v275 = vld [vmem:[%s138 + $0x368] sm:$0xff]
        %v276 = vld [vmem:[%s138 + $0x370] sm:$0xff]
        %v277 = vld [vmem:[%s138 + $0x378] sm:$0xff]
        %v278 = vld [vmem:[%s138 + $0x380] sm:$0xff]
        %v279 = vld [vmem:[%s138 + $0x388] sm:$0xff]
        %v280 = vld [vmem:[%s138 + $0x390] sm:$0xff]
        %v281 = vld [vmem:[%s138 + $0x398] sm:$0xff]
        %v282 = vld [vmem:[%s138 + $0x3a0] sm:$0xff]
        %v283 = vld [vmem:[%s138 + $0x3a8] sm:$0xff]
        %v284 = vld [vmem:[%s138 + $0x3b0] sm:$0xff]
        %v285 = vld [vmem:[%s138 + $0x3b8] sm:$0xff]
        %v286 = vld [vmem:[%s138 + $0x3c0] sm:$0xff]
        %v287 = vld [vmem:[%s138 + $0x3c8] sm:$0xff]
        %v288 = vld [vmem:[%s138 + $0x3d0] sm:$0xff]
        %v289 = vld [vmem:[%s138 + $0x3d8] sm:$0xff]
        %v290 = vld [vmem:[%s138 + $0x3e0] sm:$0xff]
        %v291 = vld [vmem:[%s138 + $0x3e8] sm:$0xff]
        %v292 = vld [vmem:[%s138 + $0x3f0] sm:$0xff]
        %v293 = vld [vmem:[%s138 + $0x3f8] sm:$0xff]
        %v294 = vld [vmem:[%s1] sm:$0xff]
        %v295 = vld [vmem:[%s1 + $0x8] sm:$0xff]
        %v296 = vld [vmem:[%s1 + $0x10] sm:$0xff]
        %v297 = vld [vmem:[%s1 + $0x18] sm:$0xff]
        %v298 = vld [vmem:[%s1 + $0x20] sm:$0xff]
        %v299 = vld [vmem:[%s1 + $0x28] sm:$0xff]
        %v300 = vld [vmem:[%s1 + $0x30] sm:$0xff]
        %v301 = vld [vmem:[%s1 + $0x38] sm:$0xff]
        %v302 = vld [vmem:[%s1 + $0x40] sm:$0xff]
        %v303 = vld [vmem:[%s1 + $0x48] sm:$0xff]
        %v304 = vld [vmem:[%s1 + $0x50] sm:$0xff]
        %v305 = vld [vmem:[%s1 + $0x58] sm:$0xff]
        %v306 = vld [vmem:[%s1 + $0x60] sm:$0xff]
        %v307 = vld [vmem:[%s1 + $0x68] sm:$0xff]
        %v308 = vld [vmem:[%s1 + $0x70] sm:$0xff]
        %v309 = vld [vmem:[%s1 + $0x78] sm:$0xff]
        %310 = vmatprep.subr.mxu0 0.0
        %311 = vmatpush1.msra.mxu0 %v309
        %312 = vmatprep.subr.mxu0 0.0
        %313 = vmatpush1.msra.mxu0 %v308
        %314 = vmatprep.subr.mxu0 0.0
        %315 = vmatpush1.msra.mxu0 %v307
        %316 = vmatprep.subr.mxu0 0.0
        %317 = vmatpush1.msra.mxu0 %v306
        %318 = vmatprep.subr.mxu0 0.0
        %319 = vmatpush1.msra.mxu0 %v305
        %320 = vmatprep.subr.mxu0 0.0
        %321 = vmatpush1.msra.mxu0 %v304
        %322 = vmatprep.subr.mxu0 0.0
        %323 = vmatpush1.msra.mxu0 %v303
        %324 = vmatprep.subr.mxu0 0.0
        %325 = vmatpush1.msra.mxu0 %v302
        %326 = vmatprep.subr.mxu0 0.0
        %327 = vmatpush1.msra.mxu0 %v301
        %328 = vmatprep.subr.mxu0 0.0
        %329 = vmatpush1.msra.mxu0 %v300
        %330 = vmatprep.subr.mxu0 0.0
        %331 = vmatpush1.msra.mxu0 %v299
        %332 = vmatprep.subr.mxu0 0.0
        %333 = vmatpush1.msra.mxu0 %v298
        %334 = vmatprep.subr.mxu0 0.0
        %335 = vmatpush1.msra.mxu0 %v297
        %336 = vmatprep.subr.mxu0 0.0
        %337 = vmatpush1.msra.mxu0 %v296
        %338 = vmatprep.subr.mxu0 0.0
        %339 = vmatpush1.msra.mxu0 %v295
        %340 = vmatprep.subr.mxu0 0.0
        %341 = vmatpush1.msra.mxu0 %v294
        %342 = vmatprep.subr.mxu0 0.0
        %343 = vmatpush2.msra.mxu0 0.0
        %344 = vmatprep.subr.mxu0 0.0
        %345 = vmatpush2.msra.mxu0 0.0
        %346 = vmatprep.subr.mxu0 0.0
        %347 = vmatpush2.msra.mxu0 0.0
        %348 = vmatprep.subr.mxu0 0.0
        %349 = vmatpush2.msra.mxu0 0.0
        %350 = vmatprep.subr.mxu0 0.0
        %351 = vmatpush2.msra.mxu0 0.0
        %352 = vmatprep.subr.mxu0 0.0
        %353 = vmatpush2.msra.mxu0 0.0
        %354 = vmatprep.subr.mxu0 0.0
        %355 = vmatpush2.msra.mxu0 0.0
        %356 = vmatprep.subr.mxu0 0.0
        %357 = vmatpush2.msra.mxu0 0.0
        %358 = vmatprep.subr.mxu0 0.0
        %359 = vmatpush2.msra.mxu0 0.0
        %360 = vmatprep.subr.mxu0 0.0
        %361 = vmatpush2.msra.mxu0 0.0
        %362 = vmatprep.subr.mxu0 0.0
        %363 = vmatpush2.msra.mxu0 0.0
        %364 = vmatprep.subr.mxu0 0.0
        %365 = vmatpush2.msra.mxu0 0.0
        %366 = vmatprep.subr.mxu0 0.0
        %367 = vmatpush2.msra.mxu0 0.0
        %368 = vmatprep.subr.mxu0 0.0
        %369 = vmatpush2.msra.mxu0 0.0
        %370 = vmatprep.subr.mxu0 0.0
        %371 = vmatpush2.msra.mxu0 0.0
        %372 = vmatprep.subr.mxu0 0.0
        %373 = vmatpush2.msra.mxu0 0.0
        %374 = vmatprep.mubr.f32.mxu0 0.0
        %375 = vmatmul.mubr.f32.gmra.mxu0 %v166
        %v376 = vpop.f32.mrf.mxu0
        %v377 = vadd.f32 0.0, %v376
        %v378 = vpop.f32.mrf.mxu0
        %379 = vmatprep.mubr.f32.mxu0 0.0
        %380 = vmatmul.mubr.f32.gmra.mxu0 %v167
        %v381 = vpop.f32.mrf.mxu0
        %v382 = vadd.f32 0.0, %v381
        %v383 = vpop.f32.mrf.mxu0
        %384 = vmatprep.mubr.f32.mxu0 0.0
        %385 = vmatmul.mubr.f32.gmra.mxu0 %v168
        %v386 = vpop.f32.mrf.mxu0
        %v387 = vadd.f32 0.0, %v386
        %v388 = vpop.f32.mrf.mxu0
        %389 = vmatprep.mubr.f32.mxu0 0.0
        %390 = vmatmul.mubr.f32.gmra.mxu0 %v169
        %v391 = vpop.f32.mrf.mxu0
        %v392 = vadd.f32 0.0, %v391
        %v393 = vpop.f32.mrf.mxu0
        %394 = vmatprep.mubr.f32.mxu0 0.0
        %395 = vmatmul.mubr.f32.gmra.mxu0 %v170
        %v396 = vpop.f32.mrf.mxu0
        %v397 = vadd.f32 0.0, %v396
        %v398 = vpop.f32.mrf.mxu0
        %399 = vmatprep.mubr.f32.mxu0 0.0
        %400 = vmatmul.mubr.f32.gmra.mxu0 %v171
        %v401 = vpop.f32.mrf.mxu0
        %v402 = vadd.f32 0.0, %v401
        %v403 = vpop.f32.mrf.mxu0
        %404 = vmatprep.mubr.f32.mxu0 0.0
        %405 = vmatmul.mubr.f32.gmra.mxu0 %v172
        %v406 = vpop.f32.mrf.mxu0
        %v407 = vadd.f32 0.0, %v406
        %v408 = vpop.f32.mrf.mxu0
        %409 = vmatprep.mubr.f32.mxu0 0.0
        %410 = vmatmul.mubr.f32.gmra.mxu0 %v173
        %v411 = vpop.f32.mrf.mxu0
        %v412 = vadd.f32 0.0, %v411
        %v413 = vpop.f32.mrf.mxu0
        %414 = vmatprep.mubr.f32.mxu0 0.0
        %415 = vmatmul.mubr.f32.gmra.mxu0 %v174
        %v416 = vpop.f32.mrf.mxu0
        %v417 = vadd.f32 0.0, %v416
        %v418 = vpop.f32.mrf.mxu0
        %419 = vmatprep.mubr.f32.mxu0 0.0
        %420 = vmatmul.mubr.f32.gmra.mxu0 %v175
        %v421 = vpop.f32.mrf.mxu0
        %v422 = vadd.f32 0.0, %v421
        %v423 = vpop.f32.mrf.mxu0
        %424 = vmatprep.mubr.f32.mxu0 0.0
        %425 = vmatmul.mubr.f32.gmra.mxu0 %v176
        %v426 = vpop.f32.mrf.mxu0
        %v427 = vadd.f32 0.0, %v426
        %v428 = vpop.f32.mrf.mxu0
        %429 = vmatprep.mubr.f32.mxu0 0.0
        %430 = vmatmul.mubr.f32.gmra.mxu0 %v177
        %v431 = vpop.f32.mrf.mxu0
        %v432 = vadd.f32 0.0, %v431
        %v433 = vpop.f32.mrf.mxu0
        %434 = vmatprep.mubr.f32.mxu0 0.0
        %435 = vmatmul.mubr.f32.gmra.mxu0 %v178
        %v436 = vpop.f32.mrf.mxu0
        %v437 = vadd.f32 0.0, %v436
        %v438 = vpop.f32.mrf.mxu0
        %439 = vmatprep.mubr.f32.mxu0 0.0
        %440 = vmatmul.mubr.f32.gmra.mxu0 %v179
        %v441 = vpop.f32.mrf.mxu0
        %v442 = vadd.f32 0.0, %v441
        %v443 = vpop.f32.mrf.mxu0
        %444 = vmatprep.mubr.f32.mxu0 0.0
        %445 = vmatmul.mubr.f32.gmra.mxu0 %v180
        %v446 = vpop.f32.mrf.mxu0
        %v447 = vadd.f32 0.0, %v446
        %v448 = vpop.f32.mrf.mxu0
        %449 = vmatprep.mubr.f32.mxu0 0.0
        %450 = vmatmul.mubr.f32.gmra.mxu0 %v181
        %v451 = vpop.f32.mrf.mxu0
        %v452 = vadd.f32 0.0, %v451
        %v453 = vpop.f32.mrf.mxu0
        %454 = vmatprep.mubr.f32.mxu0 0.0
        %455 = vmatmul.mubr.f32.gmra.mxu0 %v182
        %v456 = vpop.f32.mrf.mxu0
        %v457 = vadd.f32 0.0, %v456
        %v458 = vpop.f32.mrf.mxu0
        %459 = vmatprep.mubr.f32.mxu0 0.0
        %460 = vmatmul.mubr.f32.gmra.mxu0 %v183
        %v461 = vpop.f32.mrf.mxu0
        %v462 = vadd.f32 0.0, %v461
        %v463 = vpop.f32.mrf.mxu0
        %464 = vmatprep.mubr.f32.mxu0 0.0
        %465 = vmatmul.mubr.f32.gmra.mxu0 %v184
        %v466 = vpop.f32.mrf.mxu0
        %v467 = vadd.f32 0.0, %v466
        %v468 = vpop.f32.mrf.mxu0
        %469 = vmatprep.mubr.f32.mxu0 0.0
        %470 = vmatmul.mubr.f32.gmra.mxu0 %v185
        %v471 = vpop.f32.mrf.mxu0
        %v472 = vadd.f32 0.0, %v471
        %v473 = vpop.f32.mrf.mxu0
        %474 = vmatprep.mubr.f32.mxu0 0.0
        %475 = vmatmul.mubr.f32.gmra.mxu0 %v186
        %v476 = vpop.f32.mrf.mxu0
        %v477 = vadd.f32 0.0, %v476
        %v478 = vpop.f32.mrf.mxu0
        %479 = vmatprep.mubr.f32.mxu0 0.0
        %480 = vmatmul.mubr.f32.gmra.mxu0 %v187
        %v481 = vpop.f32.mrf.mxu0
        %v482 = vadd.f32 0.0, %v481
        %v483 = vpop.f32.mrf.mxu0
        %484 = vmatprep.mubr.f32.mxu0 0.0
        %485 = vmatmul.mubr.f32.gmra.mxu0 %v188
        %v486 = vpop.f32.mrf.mxu0
        %v487 = vadd.f32 0.0, %v486
        %v488 = vpop.f32.mrf.mxu0
        %489 = vmatprep.mubr.f32.mxu0 0.0
        %490 = vmatmul.mubr.f32.gmra.mxu0 %v189
        %v491 = vpop.f32.mrf.mxu0
        %v492 = vadd.f32 0.0, %v491
        %v493 = vpop.f32.mrf.mxu0
        %494 = vmatprep.mubr.f32.mxu0 0.0
        %495 = vmatmul.mubr.f32.gmra.mxu0 %v190
        %v496 = vpop.f32.mrf.mxu0
        %v497 = vadd.f32 0.0, %v496
        %v498 = vpop.f32.mrf.mxu0
        %499 = vmatprep.mubr.f32.mxu0 0.0
        %500 = vmatmul.mubr.f32.gmra.mxu0 %v191
        %v501 = vpop.f32.mrf.mxu0
        %v502 = vadd.f32 0.0, %v501
        %v503 = vpop.f32.mrf.mxu0
        %504 = vmatprep.mubr.f32.mxu0 0.0
        %505 = vmatmul.mubr.f32.gmra.mxu0 %v192
        %v506 = vpop.f32.mrf.mxu0
        %v507 = vadd.f32 0.0, %v506
        %v508 = vpop.f32.mrf.mxu0
        %509 = vmatprep.mubr.f32.mxu0 0.0
        %510 = vmatmul.mubr.f32.gmra.mxu0 %v193
        %v511 = vpop.f32.mrf.mxu0
        %v512 = vadd.f32 0.0, %v511
        %v513 = vpop.f32.mrf.mxu0
        %514 = vmatprep.mubr.f32.mxu0 0.0
        %515 = vmatmul.mubr.f32.gmra.mxu0 %v194
        %v516 = vpop.f32.mrf.mxu0
        %v517 = vadd.f32 0.0, %v516
        %v518 = vpop.f32.mrf.mxu0
        %519 = vmatprep.mubr.f32.mxu0 0.0
        %520 = vmatmul.mubr.f32.gmra.mxu0 %v195
        %v521 = vpop.f32.mrf.mxu0
        %v522 = vadd.f32 0.0, %v521
        %v523 = vpop.f32.mrf.mxu0
        %524 = vmatprep.mubr.f32.mxu0 0.0
        %525 = vmatmul.mubr.f32.gmra.mxu0 %v196
        %v526 = vpop.f32.mrf.mxu0
        %v527 = vadd.f32 0.0, %v526
        %v528 = vpop.f32.mrf.mxu0
        %529 = vmatprep.mubr.f32.mxu0 0.0
        %530 = vmatmul.mubr.f32.gmra.mxu0 %v197
        %v531 = vpop.f32.mrf.mxu0
        %v532 = vadd.f32 0.0, %v531
        %v533 = vpop.f32.mrf.mxu0
        %534 = vmatprep.mubr.f32.mxu0 0.0
        %535 = vmatmul.mubr.f32.gmra.mxu0 %v198
        %v536 = vpop.f32.mrf.mxu0
        %v537 = vadd.f32 0.0, %v536
        %v538 = vpop.f32.mrf.mxu0
        %539 = vmatprep.mubr.f32.mxu0 0.0
        %540 = vmatmul.mubr.f32.gmra.mxu0 %v199
        %v541 = vpop.f32.mrf.mxu0
        %v542 = vadd.f32 0.0, %v541
        %v543 = vpop.f32.mrf.mxu0
        %544 = vmatprep.mubr.f32.mxu0 0.0
        %545 = vmatmul.mubr.f32.gmra.mxu0 %v200
        %v546 = vpop.f32.mrf.mxu0
        %v547 = vadd.f32 0.0, %v546
        %v548 = vpop.f32.mrf.mxu0
        %549 = vmatprep.mubr.f32.mxu0 0.0
        %550 = vmatmul.mubr.f32.gmra.mxu0 %v201
        %v551 = vpop.f32.mrf.mxu0
        %v552 = vadd.f32 0.0, %v551
        %v553 = vpop.f32.mrf.mxu0
        %554 = vmatprep.mubr.f32.mxu0 0.0
        %555 = vmatmul.mubr.f32.gmra.mxu0 %v202
        %v556 = vpop.f32.mrf.mxu0
        %v557 = vadd.f32 0.0, %v556
        %v558 = vpop.f32.mrf.mxu0
        %559 = vmatprep.mubr.f32.mxu0 0.0
        %560 = vmatmul.mubr.f32.gmra.mxu0 %v203
        %v561 = vpop.f32.mrf.mxu0
        %v562 = vadd.f32 0.0, %v561
        %v563 = vpop.f32.mrf.mxu0
        %564 = vmatprep.mubr.f32.mxu0 0.0
        %565 = vmatmul.mubr.f32.gmra.mxu0 %v204
        %v566 = vpop.f32.mrf.mxu0
        %v567 = vadd.f32 0.0, %v566
        %v568 = vpop.f32.mrf.mxu0
        %569 = vmatprep.mubr.f32.mxu0 0.0
        %570 = vmatmul.mubr.f32.gmra.mxu0 %v205
        %v571 = vpop.f32.mrf.mxu0
        %v572 = vadd.f32 0.0, %v571
        %v573 = vpop.f32.mrf.mxu0
        %574 = vmatprep.mubr.f32.mxu0 0.0
        %575 = vmatmul.mubr.f32.gmra.mxu0 %v206
        %v576 = vpop.f32.mrf.mxu0
        %v577 = vadd.f32 0.0, %v576
        %v578 = vpop.f32.mrf.mxu0
        %579 = vmatprep.mubr.f32.mxu0 0.0
        %580 = vmatmul.mubr.f32.gmra.mxu0 %v207
        %v581 = vpop.f32.mrf.mxu0
        %v582 = vadd.f32 0.0, %v581
        %v583 = vpop.f32.mrf.mxu0
        %584 = vmatprep.mubr.f32.mxu0 0.0
        %585 = vmatmul.mubr.f32.gmra.mxu0 %v208
        %v586 = vpop.f32.mrf.mxu0
        %v587 = vadd.f32 0.0, %v586
        %v588 = vpop.f32.mrf.mxu0
        %589 = vmatprep.mubr.f32.mxu0 0.0
        %590 = vmatmul.mubr.f32.gmra.mxu0 %v209
        %v591 = vpop.f32.mrf.mxu0
        %v592 = vadd.f32 0.0, %v591
        %v593 = vpop.f32.mrf.mxu0
        %594 = vmatprep.mubr.f32.mxu0 0.0
        %595 = vmatmul.mubr.f32.gmra.mxu0 %v210
        %v596 = vpop.f32.mrf.mxu0
        %v597 = vadd.f32 0.0, %v596
        %v598 = vpop.f32.mrf.mxu0
        %599 = vmatprep.mubr.f32.mxu0 0.0
        %600 = vmatmul.mubr.f32.gmra.mxu0 %v211
        %v601 = vpop.f32.mrf.mxu0
        %v602 = vadd.f32 0.0, %v601
        %v603 = vpop.f32.mrf.mxu0
        %604 = vmatprep.mubr.f32.mxu0 0.0
        %605 = vmatmul.mubr.f32.gmra.mxu0 %v212
        %v606 = vpop.f32.mrf.mxu0
        %v607 = vadd.f32 0.0, %v606
        %v608 = vpop.f32.mrf.mxu0
        %609 = vmatprep.mubr.f32.mxu0 0.0
        %610 = vmatmul.mubr.f32.gmra.mxu0 %v213
        %v611 = vpop.f32.mrf.mxu0
        %v612 = vadd.f32 0.0, %v611
        %v613 = vpop.f32.mrf.mxu0
        %614 = vmatprep.mubr.f32.mxu0 0.0
        %615 = vmatmul.mubr.f32.gmra.mxu0 %v214
        %v616 = vpop.f32.mrf.mxu0
        %v617 = vadd.f32 0.0, %v616
        %v618 = vpop.f32.mrf.mxu0
        %619 = vmatprep.mubr.f32.mxu0 0.0
        %620 = vmatmul.mubr.f32.gmra.mxu0 %v215
        %v621 = vpop.f32.mrf.mxu0
        %v622 = vadd.f32 0.0, %v621
        %v623 = vpop.f32.mrf.mxu0
        %624 = vmatprep.mubr.f32.mxu0 0.0
        %625 = vmatmul.mubr.f32.gmra.mxu0 %v216
        %v626 = vpop.f32.mrf.mxu0
        %v627 = vadd.f32 0.0, %v626
        %v628 = vpop.f32.mrf.mxu0
        %629 = vmatprep.mubr.f32.mxu0 0.0
        %630 = vmatmul.mubr.f32.gmra.mxu0 %v217
        %v631 = vpop.f32.mrf.mxu0
        %v632 = vadd.f32 0.0, %v631
        %v633 = vpop.f32.mrf.mxu0
        %634 = vmatprep.mubr.f32.mxu0 0.0
        %635 = vmatmul.mubr.f32.gmra.mxu0 %v218
        %v636 = vpop.f32.mrf.mxu0
        %v637 = vadd.f32 0.0, %v636
        %v638 = vpop.f32.mrf.mxu0
        %639 = vmatprep.mubr.f32.mxu0 0.0
        %640 = vmatmul.mubr.f32.gmra.mxu0 %v219
        %v641 = vpop.f32.mrf.mxu0
        %v642 = vadd.f32 0.0, %v641
        %v643 = vpop.f32.mrf.mxu0
        %644 = vmatprep.mubr.f32.mxu0 0.0
        %645 = vmatmul.mubr.f32.gmra.mxu0 %v220
        %v646 = vpop.f32.mrf.mxu0
        %v647 = vadd.f32 0.0, %v646
        %v648 = vpop.f32.mrf.mxu0
        %649 = vmatprep.mubr.f32.mxu0 0.0
        %650 = vmatmul.mubr.f32.gmra.mxu0 %v221
        %v651 = vpop.f32.mrf.mxu0
        %v652 = vadd.f32 0.0, %v651
        %v653 = vpop.f32.mrf.mxu0
        %654 = vmatprep.mubr.f32.mxu0 0.0
        %655 = vmatmul.mubr.f32.gmra.mxu0 %v222
        %v656 = vpop.f32.mrf.mxu0
        %v657 = vadd.f32 0.0, %v656
        %v658 = vpop.f32.mrf.mxu0
        %659 = vmatprep.mubr.f32.mxu0 0.0
        %660 = vmatmul.mubr.f32.gmra.mxu0 %v223
        %v661 = vpop.f32.mrf.mxu0
        %v662 = vadd.f32 0.0, %v661
        %v663 = vpop.f32.mrf.mxu0
        %664 = vmatprep.mubr.f32.mxu0 0.0
        %665 = vmatmul.mubr.f32.gmra.mxu0 %v224
        %v666 = vpop.f32.mrf.mxu0
        %v667 = vadd.f32 0.0, %v666
        %v668 = vpop.f32.mrf.mxu0
        %669 = vmatprep.mubr.f32.mxu0 0.0
        %670 = vmatmul.mubr.f32.gmra.mxu0 %v225
        %v671 = vpop.f32.mrf.mxu0
        %v672 = vadd.f32 0.0, %v671
        %v673 = vpop.f32.mrf.mxu0
        %674 = vmatprep.mubr.f32.mxu0 0.0
        %675 = vmatmul.mubr.f32.gmra.mxu0 %v226
        %v676 = vpop.f32.mrf.mxu0
        %v677 = vadd.f32 0.0, %v676
        %v678 = vpop.f32.mrf.mxu0
        %679 = vmatprep.mubr.f32.mxu0 0.0
        %680 = vmatmul.mubr.f32.gmra.mxu0 %v227
        %v681 = vpop.f32.mrf.mxu0
        %v682 = vadd.f32 0.0, %v681
        %v683 = vpop.f32.mrf.mxu0
        %684 = vmatprep.mubr.f32.mxu0 0.0
        %685 = vmatmul.mubr.f32.gmra.mxu0 %v228
        %v686 = vpop.f32.mrf.mxu0
        %v687 = vadd.f32 0.0, %v686
        %v688 = vpop.f32.mrf.mxu0
        %689 = vmatprep.mubr.f32.mxu0 0.0
        %690 = vmatmul.mubr.f32.gmra.mxu0 %v229
        %v691 = vpop.f32.mrf.mxu0
        %v692 = vadd.f32 0.0, %v691
        %v693 = vpop.f32.mrf.mxu0
        %694 = vmatprep.mubr.f32.mxu0 0.0
        %695 = vmatmul.mubr.f32.gmra.mxu0 %v230
        %v696 = vpop.f32.mrf.mxu0
        %v697 = vadd.f32 0.0, %v696
        %v698 = vpop.f32.mrf.mxu0
        %699 = vmatprep.mubr.f32.mxu0 0.0
        %700 = vmatmul.mubr.f32.gmra.mxu0 %v231
        %v701 = vpop.f32.mrf.mxu0
        %v702 = vadd.f32 0.0, %v701
        %v703 = vpop.f32.mrf.mxu0
        %704 = vmatprep.mubr.f32.mxu0 0.0
        %705 = vmatmul.mubr.f32.gmra.mxu0 %v232
        %v706 = vpop.f32.mrf.mxu0
        %v707 = vadd.f32 0.0, %v706
        %v708 = vpop.f32.mrf.mxu0
        %709 = vmatprep.mubr.f32.mxu0 0.0
        %710 = vmatmul.mubr.f32.gmra.mxu0 %v233
        %v711 = vpop.f32.mrf.mxu0
        %v712 = vadd.f32 0.0, %v711
        %v713 = vpop.f32.mrf.mxu0
        %714 = vmatprep.mubr.f32.mxu0 0.0
        %715 = vmatmul.mubr.f32.gmra.mxu0 %v234
        %v716 = vpop.f32.mrf.mxu0
        %v717 = vadd.f32 0.0, %v716
        %v718 = vpop.f32.mrf.mxu0
        %719 = vmatprep.mubr.f32.mxu0 0.0
        %720 = vmatmul.mubr.f32.gmra.mxu0 %v235
        %v721 = vpop.f32.mrf.mxu0
        %v722 = vadd.f32 0.0, %v721
        %v723 = vpop.f32.mrf.mxu0
        %724 = vmatprep.mubr.f32.mxu0 0.0
        %725 = vmatmul.mubr.f32.gmra.mxu0 %v236
        %v726 = vpop.f32.mrf.mxu0
        %v727 = vadd.f32 0.0, %v726
        %v728 = vpop.f32.mrf.mxu0
        %729 = vmatprep.mubr.f32.mxu0 0.0
        %730 = vmatmul.mubr.f32.gmra.mxu0 %v237
        %v731 = vpop.f32.mrf.mxu0
        %v732 = vadd.f32 0.0, %v731
        %v733 = vpop.f32.mrf.mxu0
        %734 = vmatprep.mubr.f32.mxu0 0.0
        %735 = vmatmul.mubr.f32.gmra.mxu0 %v238
        %v736 = vpop.f32.mrf.mxu0
        %v737 = vadd.f32 0.0, %v736
        %v738 = vpop.f32.mrf.mxu0
        %739 = vmatprep.mubr.f32.mxu0 0.0
        %740 = vmatmul.mubr.f32.gmra.mxu0 %v239
        %v741 = vpop.f32.mrf.mxu0
        %v742 = vadd.f32 0.0, %v741
        %v743 = vpop.f32.mrf.mxu0
        %744 = vmatprep.mubr.f32.mxu0 0.0
        %745 = vmatmul.mubr.f32.gmra.mxu0 %v240
        %v746 = vpop.f32.mrf.mxu0
        %v747 = vadd.f32 0.0, %v746
        %v748 = vpop.f32.mrf.mxu0
        %749 = vmatprep.mubr.f32.mxu0 0.0
        %750 = vmatmul.mubr.f32.gmra.mxu0 %v241
        %v751 = vpop.f32.mrf.mxu0
        %v752 = vadd.f32 0.0, %v751
        %v753 = vpop.f32.mrf.mxu0
        %754 = vmatprep.mubr.f32.mxu0 0.0
        %755 = vmatmul.mubr.f32.gmra.mxu0 %v242
        %v756 = vpop.f32.mrf.mxu0
        %v757 = vadd.f32 0.0, %v756
        %v758 = vpop.f32.mrf.mxu0
        %759 = vmatprep.mubr.f32.mxu0 0.0
        %760 = vmatmul.mubr.f32.gmra.mxu0 %v243
        %v761 = vpop.f32.mrf.mxu0
        %v762 = vadd.f32 0.0, %v761
        %v763 = vpop.f32.mrf.mxu0
        %764 = vmatprep.mubr.f32.mxu0 0.0
        %765 = vmatmul.mubr.f32.gmra.mxu0 %v244
        %v766 = vpop.f32.mrf.mxu0
        %v767 = vadd.f32 0.0, %v766
        %v768 = vpop.f32.mrf.mxu0
        %769 = vmatprep.mubr.f32.mxu0 0.0
        %770 = vmatmul.mubr.f32.gmra.mxu0 %v245
        %v771 = vpop.f32.mrf.mxu0
        %v772 = vadd.f32 0.0, %v771
        %v773 = vpop.f32.mrf.mxu0
        %774 = vmatprep.mubr.f32.mxu0 0.0
        %775 = vmatmul.mubr.f32.gmra.mxu0 %v246
        %v776 = vpop.f32.mrf.mxu0
        %v777 = vadd.f32 0.0, %v776
        %v778 = vpop.f32.mrf.mxu0
        %779 = vmatprep.mubr.f32.mxu0 0.0
        %780 = vmatmul.mubr.f32.gmra.mxu0 %v247
        %v781 = vpop.f32.mrf.mxu0
        %v782 = vadd.f32 0.0, %v781
        %v783 = vpop.f32.mrf.mxu0
        %784 = vmatprep.mubr.f32.mxu0 0.0
        %785 = vmatmul.mubr.f32.gmra.mxu0 %v248
        %v786 = vpop.f32.mrf.mxu0
        %v787 = vadd.f32 0.0, %v786
        %v788 = vpop.f32.mrf.mxu0
        %789 = vmatprep.mubr.f32.mxu0 0.0
        %790 = vmatmul.mubr.f32.gmra.mxu0 %v249
        %v791 = vpop.f32.mrf.mxu0
        %v792 = vadd.f32 0.0, %v791
        %v793 = vpop.f32.mrf.mxu0
        %794 = vmatprep.mubr.f32.mxu0 0.0
        %795 = vmatmul.mubr.f32.gmra.mxu0 %v250
        %v796 = vpop.f32.mrf.mxu0
        %v797 = vadd.f32 0.0, %v796
        %v798 = vpop.f32.mrf.mxu0
        %799 = vmatprep.mubr.f32.mxu0 0.0
        %800 = vmatmul.mubr.f32.gmra.mxu0 %v251
        %v801 = vpop.f32.mrf.mxu0
        %v802 = vadd.f32 0.0, %v801
        %v803 = vpop.f32.mrf.mxu0
        %804 = vmatprep.mubr.f32.mxu0 0.0
        %805 = vmatmul.mubr.f32.gmra.mxu0 %v252
        %v806 = vpop.f32.mrf.mxu0
        %v807 = vadd.f32 0.0, %v806
        %v808 = vpop.f32.mrf.mxu0
        %809 = vmatprep.mubr.f32.mxu0 0.0
        %810 = vmatmul.mubr.f32.gmra.mxu0 %v253
        %v811 = vpop.f32.mrf.mxu0
        %v812 = vadd.f32 0.0, %v811
        %v813 = vpop.f32.mrf.mxu0
        %814 = vmatprep.mubr.f32.mxu0 0.0
        %815 = vmatmul.mubr.f32.gmra.mxu0 %v254
        %v816 = vpop.f32.mrf.mxu0
        %v817 = vadd.f32 0.0, %v816
        %v818 = vpop.f32.mrf.mxu0
        %819 = vmatprep.mubr.f32.mxu0 0.0
        %820 = vmatmul.mubr.f32.gmra.mxu0 %v255
        %v821 = vpop.f32.mrf.mxu0
        %v822 = vadd.f32 0.0, %v821
        %v823 = vpop.f32.mrf.mxu0
        %824 = vmatprep.mubr.f32.mxu0 0.0
        %825 = vmatmul.mubr.f32.gmra.mxu0 %v256
        %v826 = vpop.f32.mrf.mxu0
        %v827 = vadd.f32 0.0, %v826
        %v828 = vpop.f32.mrf.mxu0
        %829 = vmatprep.mubr.f32.mxu0 0.0
        %830 = vmatmul.mubr.f32.gmra.mxu0 %v257
        %v831 = vpop.f32.mrf.mxu0
        %v832 = vadd.f32 0.0, %v831
        %v833 = vpop.f32.mrf.mxu0
        %834 = vmatprep.mubr.f32.mxu0 0.0
        %835 = vmatmul.mubr.f32.gmra.mxu0 %v258
        %v836 = vpop.f32.mrf.mxu0
        %v837 = vadd.f32 0.0, %v836
        %v838 = vpop.f32.mrf.mxu0
        %839 = vmatprep.mubr.f32.mxu0 0.0
        %840 = vmatmul.mubr.f32.gmra.mxu0 %v259
        %v841 = vpop.f32.mrf.mxu0
        %v842 = vadd.f32 0.0, %v841
        %v843 = vpop.f32.mrf.mxu0
        %844 = vmatprep.mubr.f32.mxu0 0.0
        %845 = vmatmul.mubr.f32.gmra.mxu0 %v260
        %v846 = vpop.f32.mrf.mxu0
        %v847 = vadd.f32 0.0, %v846
        %v848 = vpop.f32.mrf.mxu0
        %849 = vmatprep.mubr.f32.mxu0 0.0
        %850 = vmatmul.mubr.f32.gmra.mxu0 %v261
        %v851 = vpop.f32.mrf.mxu0
        %v852 = vadd.f32 0.0, %v851
        %v853 = vpop.f32.mrf.mxu0
        %854 = vmatprep.mubr.f32.mxu0 0.0
        %855 = vmatmul.mubr.f32.gmra.mxu0 %v262
        %v856 = vpop.f32.mrf.mxu0
        %v857 = vadd.f32 0.0, %v856
        %v858 = vpop.f32.mrf.mxu0
        %859 = vmatprep.mubr.f32.mxu0 0.0
        %860 = vmatmul.mubr.f32.gmra.mxu0 %v263
        %v861 = vpop.f32.mrf.mxu0
        %v862 = vadd.f32 0.0, %v861
        %v863 = vpop.f32.mrf.mxu0
        %864 = vmatprep.mubr.f32.mxu0 0.0
        %865 = vmatmul.mubr.f32.gmra.mxu0 %v264
        %v866 = vpop.f32.mrf.mxu0
        %v867 = vadd.f32 0.0, %v866
        %v868 = vpop.f32.mrf.mxu0
        %869 = vmatprep.mubr.f32.mxu0 0.0
        %870 = vmatmul.mubr.f32.gmra.mxu0 %v265
        %v871 = vpop.f32.mrf.mxu0
        %v872 = vadd.f32 0.0, %v871
        %v873 = vpop.f32.mrf.mxu0
        %874 = vmatprep.mubr.f32.mxu0 0.0
        %875 = vmatmul.mubr.f32.gmra.mxu0 %v266
        %v876 = vpop.f32.mrf.mxu0
        %v877 = vadd.f32 0.0, %v876
        %v878 = vpop.f32.mrf.mxu0
        %879 = vmatprep.mubr.f32.mxu0 0.0
        %880 = vmatmul.mubr.f32.gmra.mxu0 %v267
        %v881 = vpop.f32.mrf.mxu0
        %v882 = vadd.f32 0.0, %v881
        %v883 = vpop.f32.mrf.mxu0
        %884 = vmatprep.mubr.f32.mxu0 0.0
        %885 = vmatmul.mubr.f32.gmra.mxu0 %v268
        %v886 = vpop.f32.mrf.mxu0
        %v887 = vadd.f32 0.0, %v886
        %v888 = vpop.f32.mrf.mxu0
        %889 = vmatprep.mubr.f32.mxu0 0.0
        %890 = vmatmul.mubr.f32.gmra.mxu0 %v269
        %v891 = vpop.f32.mrf.mxu0
        %v892 = vadd.f32 0.0, %v891
        %v893 = vpop.f32.mrf.mxu0
        %894 = vmatprep.mubr.f32.mxu0 0.0
        %895 = vmatmul.mubr.f32.gmra.mxu0 %v270
        %v896 = vpop.f32.mrf.mxu0
        %v897 = vadd.f32 0.0, %v896
        %v898 = vpop.f32.mrf.mxu0
        %899 = vmatprep.mubr.f32.mxu0 0.0
        %900 = vmatmul.mubr.f32.gmra.mxu0 %v271
        %v901 = vpop.f32.mrf.mxu0
        %v902 = vadd.f32 0.0, %v901
        %v903 = vpop.f32.mrf.mxu0
        %904 = vmatprep.mubr.f32.mxu0 0.0
        %905 = vmatmul.mubr.f32.gmra.mxu0 %v272
        %v906 = vpop.f32.mrf.mxu0
        %v907 = vadd.f32 0.0, %v906
        %v908 = vpop.f32.mrf.mxu0
        %909 = vmatprep.mubr.f32.mxu0 0.0
        %910 = vmatmul.mubr.f32.gmra.mxu0 %v273
        %v911 = vpop.f32.mrf.mxu0
        %v912 = vadd.f32 0.0, %v911
        %v913 = vpop.f32.mrf.mxu0
        %914 = vmatprep.mubr.f32.mxu0 0.0
        %915 = vmatmul.mubr.f32.gmra.mxu0 %v274
        %v916 = vpop.f32.mrf.mxu0
        %v917 = vadd.f32 0.0, %v916
        %v918 = vpop.f32.mrf.mxu0
        %919 = vmatprep.mubr.f32.mxu0 0.0
        %920 = vmatmul.mubr.f32.gmra.mxu0 %v275
        %v921 = vpop.f32.mrf.mxu0
        %v922 = vadd.f32 0.0, %v921
        %v923 = vpop.f32.mrf.mxu0
        %924 = vmatprep.mubr.f32.mxu0 0.0
        %925 = vmatmul.mubr.f32.gmra.mxu0 %v276
        %v926 = vpop.f32.mrf.mxu0
        %v927 = vadd.f32 0.0, %v926
        %v928 = vpop.f32.mrf.mxu0
        %929 = vmatprep.mubr.f32.mxu0 0.0
        %930 = vmatmul.mubr.f32.gmra.mxu0 %v277
        %v931 = vpop.f32.mrf.mxu0
        %v932 = vadd.f32 0.0, %v931
        %v933 = vpop.f32.mrf.mxu0
        %934 = vmatprep.mubr.f32.mxu0 0.0
        %935 = vmatmul.mubr.f32.gmra.mxu0 %v278
        %v936 = vpop.f32.mrf.mxu0
        %v937 = vadd.f32 0.0, %v936
        %v938 = vpop.f32.mrf.mxu0
        %939 = vmatprep.mubr.f32.mxu0 0.0
        %940 = vmatmul.mubr.f32.gmra.mxu0 %v279
        %v941 = vpop.f32.mrf.mxu0
        %v942 = vadd.f32 0.0, %v941
        %v943 = vpop.f32.mrf.mxu0
        %944 = vmatprep.mubr.f32.mxu0 0.0
        %945 = vmatmul.mubr.f32.gmra.mxu0 %v280
        %v946 = vpop.f32.mrf.mxu0
        %v947 = vadd.f32 0.0, %v946
        %v948 = vpop.f32.mrf.mxu0
        %949 = vmatprep.mubr.f32.mxu0 0.0
        %950 = vmatmul.mubr.f32.gmra.mxu0 %v281
        %v951 = vpop.f32.mrf.mxu0
        %v952 = vadd.f32 0.0, %v951
        %v953 = vpop.f32.mrf.mxu0
        %954 = vmatprep.mubr.f32.mxu0 0.0
        %955 = vmatmul.mubr.f32.gmra.mxu0 %v282
        %v956 = vpop.f32.mrf.mxu0
        %v957 = vadd.f32 0.0, %v956
        %v958 = vpop.f32.mrf.mxu0
        %959 = vmatprep.mubr.f32.mxu0 0.0
        %960 = vmatmul.mubr.f32.gmra.mxu0 %v283
        %v961 = vpop.f32.mrf.mxu0
        %v962 = vadd.f32 0.0, %v961
        %v963 = vpop.f32.mrf.mxu0
        %964 = vmatprep.mubr.f32.mxu0 0.0
        %965 = vmatmul.mubr.f32.gmra.mxu0 %v284
        %v966 = vpop.f32.mrf.mxu0
        %v967 = vadd.f32 0.0, %v966
        %v968 = vpop.f32.mrf.mxu0
        %969 = vmatprep.mubr.f32.mxu0 0.0
        %970 = vmatmul.mubr.f32.gmra.mxu0 %v285
        %v971 = vpop.f32.mrf.mxu0
        %v972 = vadd.f32 0.0, %v971
        %v973 = vpop.f32.mrf.mxu0
        %974 = vmatprep.mubr.f32.mxu0 0.0
        %975 = vmatmul.mubr.f32.gmra.mxu0 %v286
        %v976 = vpop.f32.mrf.mxu0
        %v977 = vadd.f32 0.0, %v976
        %v978 = vpop.f32.mrf.mxu0
        %979 = vmatprep.mubr.f32.mxu0 0.0
        %980 = vmatmul.mubr.f32.gmra.mxu0 %v287
        %v981 = vpop.f32.mrf.mxu0
        %v982 = vadd.f32 0.0, %v981
        %v983 = vpop.f32.mrf.mxu0
        %984 = vmatprep.mubr.f32.mxu0 0.0
        %985 = vmatmul.mubr.f32.gmra.mxu0 %v288
        %v986 = vpop.f32.mrf.mxu0
        %v987 = vadd.f32 0.0, %v986
        %v988 = vpop.f32.mrf.mxu0
        %989 = vmatprep.mubr.f32.mxu0 0.0
        %990 = vmatmul.mubr.f32.gmra.mxu0 %v289
        %v991 = vpop.f32.mrf.mxu0
        %v992 = vadd.f32 0.0, %v991
        %v993 = vpop.f32.mrf.mxu0
        %994 = vmatprep.mubr.f32.mxu0 0.0
        %995 = vmatmul.mubr.f32.gmra.mxu0 %v290
        %v996 = vpop.f32.mrf.mxu0
        %v997 = vadd.f32 0.0, %v996
        %v998 = vpop.f32.mrf.mxu0
        %999 = vmatprep.mubr.f32.mxu0 0.0
        %1000 = vmatmul.mubr.f32.gmra.mxu0 %v291
        %v1001 = vpop.f32.mrf.mxu0
        %v1002 = vadd.f32 0.0, %v1001
        %v1003 = vpop.f32.mrf.mxu0
        %1004 = vmatprep.mubr.f32.mxu0 0.0
        %1005 = vmatmul.mubr.f32.gmra.mxu0 %v292
        %v1006 = vpop.f32.mrf.mxu0
        %v1007 = vadd.f32 0.0, %v1006
        %v1008 = vpop.f32.mrf.mxu0
        %1009 = vmatprep.mubr.f32.mxu0 0.0
        %1010 = vmatmul.mubr.f32.gmra.mxu0 %v293
        %v1011 = vpop.f32.mrf.mxu0
        %v1012 = vadd.f32 0.0, %v1011
        %v1013 = vpop.f32.mrf.mxu0
        %1014 = vdwg.mxu0
        %vm1015 = vcmask 261120
        %1016 = vst.msk [vmem:[%s164] sm:$0xff] %vm1015, %v377
        %1017 = vst.msk [vmem:[%s164 + $0x8] sm:$0xff] %vm1015, %v382
        %1018 = vst.msk [vmem:[%s164 + $0x10] sm:$0xff] %vm1015, %v387
        %1019 = vst.msk [vmem:[%s164 + $0x18] sm:$0xff] %vm1015, %v392
        %1020 = vst.msk [vmem:[%s164 + $0x20] sm:$0xff] %vm1015, %v397
        %1021 = vst.msk [vmem:[%s164 + $0x28] sm:$0xff] %vm1015, %v402
        %1022 = vst.msk [vmem:[%s164 + $0x30] sm:$0xff] %vm1015, %v407
        %1023 = vst.msk [vmem:[%s164 + $0x38] sm:$0xff] %vm1015, %v412
        %1024 = vst.msk [vmem:[%s164 + $0x40] sm:$0xff] %vm1015, %v417
        %1025 = vst.msk [vmem:[%s164 + $0x48] sm:$0xff] %vm1015, %v422
        %1026 = vst.msk [vmem:[%s164 + $0x50] sm:$0xff] %vm1015, %v427
        %1027 = vst.msk [vmem:[%s164 + $0x58] sm:$0xff] %vm1015, %v432
        %1028 = vst.msk [vmem:[%s164 + $0x60] sm:$0xff] %vm1015, %v437
        %1029 = vst.msk [vmem:[%s164 + $0x68] sm:$0xff] %vm1015, %v442
        %1030 = vst.msk [vmem:[%s164 + $0x70] sm:$0xff] %vm1015, %v447
        %1031 = vst.msk [vmem:[%s164 + $0x78] sm:$0xff] %vm1015, %v452
        %1032 = vst.msk [vmem:[%s164 + $0x80] sm:$0xff] %vm1015, %v457
        %1033 = vst.msk [vmem:[%s164 + $0x88] sm:$0xff] %vm1015, %v462
        %1034 = vst.msk [vmem:[%s164 + $0x90] sm:$0xff] %vm1015, %v467
        %1035 = vst.msk [vmem:[%s164 + $0x98] sm:$0xff] %vm1015, %v472
        %1036 = vst.msk [vmem:[%s164 + $0xa0] sm:$0xff] %vm1015, %v477
        %1037 = vst.msk [vmem:[%s164 + $0xa8] sm:$0xff] %vm1015, %v482
        %1038 = vst.msk [vmem:[%s164 + $0xb0] sm:$0xff] %vm1015, %v487
        %1039 = vst.msk [vmem:[%s164 + $0xb8] sm:$0xff] %vm1015, %v492
        %1040 = vst.msk [vmem:[%s164 + $0xc0] sm:$0xff] %vm1015, %v497
        %1041 = vst.msk [vmem:[%s164 + $0xc8] sm:$0xff] %vm1015, %v502
        %1042 = vst.msk [vmem:[%s164 + $0xd0] sm:$0xff] %vm1015, %v507
        %1043 = vst.msk [vmem:[%s164 + $0xd8] sm:$0xff] %vm1015, %v512
        %1044 = vst.msk [vmem:[%s164 + $0xe0] sm:$0xff] %vm1015, %v517
        %1045 = vst.msk [vmem:[%s164 + $0xe8] sm:$0xff] %vm1015, %v522
        %1046 = vst.msk [vmem:[%s164 + $0xf0] sm:$0xff] %vm1015, %v527
        %1047 = vst.msk [vmem:[%s164 + $0xf8] sm:$0xff] %vm1015, %v532
        %1048 = vst.msk [vmem:[%s164 + $0x100] sm:$0xff] %vm1015, %v537
        %1049 = vst.msk [vmem:[%s164 + $0x108] sm:$0xff] %vm1015, %v542
        %1050 = vst.msk [vmem:[%s164 + $0x110] sm:$0xff] %vm1015, %v547
        %1051 = vst.msk [vmem:[%s164 + $0x118] sm:$0xff] %vm1015, %v552
        %1052 = vst.msk [vmem:[%s164 + $0x120] sm:$0xff] %vm1015, %v557
        %1053 = vst.msk [vmem:[%s164 + $0x128] sm:$0xff] %vm1015, %v562
        %1054 = vst.msk [vmem:[%s164 + $0x130] sm:$0xff] %vm1015, %v567
        %1055 = vst.msk [vmem:[%s164 + $0x138] sm:$0xff] %vm1015, %v572
        %1056 = vst.msk [vmem:[%s164 + $0x140] sm:$0xff] %vm1015, %v577
        %1057 = vst.msk [vmem:[%s164 + $0x148] sm:$0xff] %vm1015, %v582
        %1058 = vst.msk [vmem:[%s164 + $0x150] sm:$0xff] %vm1015, %v587
        %1059 = vst.msk [vmem:[%s164 + $0x158] sm:$0xff] %vm1015, %v592
        %1060 = vst.msk [vmem:[%s164 + $0x160] sm:$0xff] %vm1015, %v597
        %1061 = vst.msk [vmem:[%s164 + $0x168] sm:$0xff] %vm1015, %v602
        %1062 = vst.msk [vmem:[%s164 + $0x170] sm:$0xff] %vm1015, %v607
        %1063 = vst.msk [vmem:[%s164 + $0x178] sm:$0xff] %vm1015, %v612
        %1064 = vst.msk [vmem:[%s164 + $0x180] sm:$0xff] %vm1015, %v617
        %1065 = vst.msk [vmem:[%s164 + $0x188] sm:$0xff] %vm1015, %v622
        %1066 = vst.msk [vmem:[%s164 + $0x190] sm:$0xff] %vm1015, %v627
        %1067 = vst.msk [vmem:[%s164 + $0x198] sm:$0xff] %vm1015, %v632
        %1068 = vst.msk [vmem:[%s164 + $0x1a0] sm:$0xff] %vm1015, %v637
        %1069 = vst.msk [vmem:[%s164 + $0x1a8] sm:$0xff] %vm1015, %v642
        %1070 = vst.msk [vmem:[%s164 + $0x1b0] sm:$0xff] %vm1015, %v647
        %1071 = vst.msk [vmem:[%s164 + $0x1b8] sm:$0xff] %vm1015, %v652
        %1072 = vst.msk [vmem:[%s164 + $0x1c0] sm:$0xff] %vm1015, %v657
        %1073 = vst.msk [vmem:[%s164 + $0x1c8] sm:$0xff] %vm1015, %v662
        %1074 = vst.msk [vmem:[%s164 + $0x1d0] sm:$0xff] %vm1015, %v667
        %1075 = vst.msk [vmem:[%s164 + $0x1d8] sm:$0xff] %vm1015, %v672
        %1076 = vst.msk [vmem:[%s164 + $0x1e0] sm:$0xff] %vm1015, %v677
        %1077 = vst.msk [vmem:[%s164 + $0x1e8] sm:$0xff] %vm1015, %v682
        %1078 = vst.msk [vmem:[%s164 + $0x1f0] sm:$0xff] %vm1015, %v687
        %1079 = vst.msk [vmem:[%s164 + $0x1f8] sm:$0xff] %vm1015, %v692
        %1080 = vst.msk [vmem:[%s164 + $0x200] sm:$0xff] %vm1015, %v697
        %1081 = vst.msk [vmem:[%s164 + $0x208] sm:$0xff] %vm1015, %v702
        %1082 = vst.msk [vmem:[%s164 + $0x210] sm:$0xff] %vm1015, %v707
        %1083 = vst.msk [vmem:[%s164 + $0x218] sm:$0xff] %vm1015, %v712
        %1084 = vst.msk [vmem:[%s164 + $0x220] sm:$0xff] %vm1015, %v717
        %1085 = vst.msk [vmem:[%s164 + $0x228] sm:$0xff] %vm1015, %v722
        %1086 = vst.msk [vmem:[%s164 + $0x230] sm:$0xff] %vm1015, %v727
        %1087 = vst.msk [vmem:[%s164 + $0x238] sm:$0xff] %vm1015, %v732
        %1088 = vst.msk [vmem:[%s164 + $0x240] sm:$0xff] %vm1015, %v737
        %1089 = vst.msk [vmem:[%s164 + $0x248] sm:$0xff] %vm1015, %v742
        %1090 = vst.msk [vmem:[%s164 + $0x250] sm:$0xff] %vm1015, %v747
        %1091 = vst.msk [vmem:[%s164 + $0x258] sm:$0xff] %vm1015, %v752
        %1092 = vst.msk [vmem:[%s164 + $0x260] sm:$0xff] %vm1015, %v757
        %1093 = vst.msk [vmem:[%s164 + $0x268] sm:$0xff] %vm1015, %v762
        %1094 = vst.msk [vmem:[%s164 + $0x270] sm:$0xff] %vm1015, %v767
        %1095 = vst.msk [vmem:[%s164 + $0x278] sm:$0xff] %vm1015, %v772
        %1096 = vst.msk [vmem:[%s164 + $0x280] sm:$0xff] %vm1015, %v777
        %1097 = vst.msk [vmem:[%s164 + $0x288] sm:$0xff] %vm1015, %v782
        %1098 = vst.msk [vmem:[%s164 + $0x290] sm:$0xff] %vm1015, %v787
        %1099 = vst.msk [vmem:[%s164 + $0x298] sm:$0xff] %vm1015, %v792
        %1100 = vst.msk [vmem:[%s164 + $0x2a0] sm:$0xff] %vm1015, %v797
        %1101 = vst.msk [vmem:[%s164 + $0x2a8] sm:$0xff] %vm1015, %v802
        %1102 = vst.msk [vmem:[%s164 + $0x2b0] sm:$0xff] %vm1015, %v807
        %1103 = vst.msk [vmem:[%s164 + $0x2b8] sm:$0xff] %vm1015, %v812
        %1104 = vst.msk [vmem:[%s164 + $0x2c0] sm:$0xff] %vm1015, %v817
        %1105 = vst.msk [vmem:[%s164 + $0x2c8] sm:$0xff] %vm1015, %v822
        %1106 = vst.msk [vmem:[%s164 + $0x2d0] sm:$0xff] %vm1015, %v827
        %1107 = vst.msk [vmem:[%s164 + $0x2d8] sm:$0xff] %vm1015, %v832
        %1108 = vst.msk [vmem:[%s164 + $0x2e0] sm:$0xff] %vm1015, %v837
        %1109 = vst.msk [vmem:[%s164 + $0x2e8] sm:$0xff] %vm1015, %v842
        %1110 = vst.msk [vmem:[%s164 + $0x2f0] sm:$0xff] %vm1015, %v847
        %1111 = vst.msk [vmem:[%s164 + $0x2f8] sm:$0xff] %vm1015, %v852
        %1112 = vst.msk [vmem:[%s164 + $0x300] sm:$0xff] %vm1015, %v857
        %1113 = vst.msk [vmem:[%s164 + $0x308] sm:$0xff] %vm1015, %v862
        %1114 = vst.msk [vmem:[%s164 + $0x310] sm:$0xff] %vm1015, %v867
        %1115 = vst.msk [vmem:[%s164 + $0x318] sm:$0xff] %vm1015, %v872
        %1116 = vst.msk [vmem:[%s164 + $0x320] sm:$0xff] %vm1015, %v877
        %1117 = vst.msk [vmem:[%s164 + $0x328] sm:$0xff] %vm1015, %v882
        %1118 = vst.msk [vmem:[%s164 + $0x330] sm:$0xff] %vm1015, %v887
        %1119 = vst.msk [vmem:[%s164 + $0x338] sm:$0xff] %vm1015, %v892
        %1120 = vst.msk [vmem:[%s164 + $0x340] sm:$0xff] %vm1015, %v897
        %1121 = vst.msk [vmem:[%s164 + $0x348] sm:$0xff] %vm1015, %v902
        %1122 = vst.msk [vmem:[%s164 + $0x350] sm:$0xff] %vm1015, %v907
        %1123 = vst.msk [vmem:[%s164 + $0x358] sm:$0xff] %vm1015, %v912
        %1124 = vst.msk [vmem:[%s164 + $0x360] sm:$0xff] %vm1015, %v917
        %1125 = vst.msk [vmem:[%s164 + $0x368] sm:$0xff] %vm1015, %v922
        %1126 = vst.msk [vmem:[%s164 + $0x370] sm:$0xff] %vm1015, %v927
        %1127 = vst.msk [vmem:[%s164 + $0x378] sm:$0xff] %vm1015, %v932
        %1128 = vst.msk [vmem:[%s164 + $0x380] sm:$0xff] %vm1015, %v937
        %1129 = vst.msk [vmem:[%s164 + $0x388] sm:$0xff] %vm1015, %v942
        %1130 = vst.msk [vmem:[%s164 + $0x390] sm:$0xff] %vm1015, %v947
        %1131 = vst.msk [vmem:[%s164 + $0x398] sm:$0xff] %vm1015, %v952
        %1132 = vst.msk [vmem:[%s164 + $0x3a0] sm:$0xff] %vm1015, %v957
        %1133 = vst.msk [vmem:[%s164 + $0x3a8] sm:$0xff] %vm1015, %v962
        %1134 = vst.msk [vmem:[%s164 + $0x3b0] sm:$0xff] %vm1015, %v967
        %1135 = vst.msk [vmem:[%s164 + $0x3b8] sm:$0xff] %vm1015, %v972
        %1136 = vst.msk [vmem:[%s164 + $0x3c0] sm:$0xff] %vm1015, %v977
        %1137 = vst.msk [vmem:[%s164 + $0x3c8] sm:$0xff] %vm1015, %v982
        %1138 = vst.msk [vmem:[%s164 + $0x3d0] sm:$0xff] %vm1015, %v987
        %1139 = vst.msk [vmem:[%s164 + $0x3d8] sm:$0xff] %vm1015, %v992
        %1140 = vst.msk [vmem:[%s164 + $0x3e0] sm:$0xff] %vm1015, %v997
        %1141 = vst.msk [vmem:[%s164 + $0x3e8] sm:$0xff] %vm1015, %v1002
        %1142 = vst.msk [vmem:[%s164 + $0x3f0] sm:$0xff] %vm1015, %v1007
        %1143 = vst.msk [vmem:[%s164 + $0x3f8] sm:$0xff] %vm1015, %v1012
        %s1144 = smul.u32 128, %s16
        %p1145 = scmp.lt.s32.totalorder %s1144, 255
        %s1146 = scalar_select %p1145, %s1144, 255
        %s1147 = smul.addr %s1146, 8
        %s1148 = scalar_lea.vmem %s2, %s1147
        // Predicated region
        $region33: #{tpu_custom_call.1} parent=27 // pred_check
          %p1149 = pneg %p81
        $region34: #{tpu_custom_call.1} parent=27 // pred_check_branch
          %1151 = sbr.rel (%p1149) target = $region36
        $region35: #{tpu_custom_call.1} parent=27 // pred_region
          %s1152 = smul.u32 128, %s16
        $region36: #{tpu_custom_call.1} parent=27 // pred_fallthru
          _
      $region28: #{tpu_custom_call.1} parent=5 // pred_fallthru
        _
      %p1153 = scmp.le.s32.totalorder 2, %s11
      // Predicated region
      $region37: #{tpu_custom_call.1} parent=5 // pred_check
        %p1154 = pneg %p1153
      $region38: #{tpu_custom_call.1} parent=5 // pred_check_branch
        %1156 = sbr.rel (%p1154) target = $region40
      $region39: #{tpu_custom_call.1} parent=5 // pred_region
        %s1157 = ssub.s32 %s11, 2
        // Predicated region
        $region41: #{tpu_custom_call.1} parent=39 // pred_check
          %p1158 = pneg %p87
        $region42: #{tpu_custom_call.1} parent=39 // pred_check_branch
          %1160 = sbr.rel (%p1158) target = $region44
        $region43: #{tpu_custom_call.1} parent=39 // pred_region
          %s1161 = smul.u32 128, %s17
          %p1162 = scmp.lt.s32.totalorder %s1161, 255
          %s1163 = scalar_select %p1162, %s1161, 255
          %s1164 = smul.addr %s1163, 8
          %s1165 = scalar_lea.vmem %s2, %s1164
        $region44: #{tpu_custom_call.1} parent=39 // pred_fallthru
          _
      $region40: #{tpu_custom_call.1} parent=5 // pred_fallthru
        _
    $region6: #{tpu_custom_call.1} parent=1 // loop_footer
      %s15 = sadd.s32 1, %s11
    $region7: #{tpu_custom_call.1} parent=1 // loop_footer_branch
      %10 = sbr.rel target = $region3
    $region8: #{tpu_custom_call.1} parent=1 // loop_exit
      _
    %1166 = vsyncpa [#allocation3], 1
    %s1167 = scalar_lea.sflag [#allocation3], 1
    %1168 = vsyncpa %s1167, 1

</llo_original>
